<compile_context>
chip_gen: v7x
topology: tpu7x:2x2x1
jax: 0.10.0
libtpu: 0.0.40
codegen_flags: <defaults>
</compile_context>

<pallas_src>
import functools

import jax
import jax.numpy as jnp
from jax.experimental import pallas as pl
from jax.experimental.pallas import tpu as pltpu

# ---- constants implied by the original script (synthetic, deterministic) ----
N_CLUSTERS = 100
PADDING_VALUE = 100                 # TODO(synk): PADDING_VALUE is external in the source; fixed to 100 here.
padding_value = PADDING_VALUE
INPUT_DIM = 256                     # TODO(synk): small stand-in for the real input_dim=768 (same forward semantics).
OUTPUT_DIM = padding_value + 2      # 102
ALPHA = 0.001                       # unused in forward (only in get_loss)


def _round_up(x, m):
    return ((x + m - 1) // m) * m


def fused_linear_kernel(x_ref, w_ref, b_ref, o1_ref, o2_ref, *, op_pad):
    """One row tile: acc = x @ [W1 | W1@W2] + [b1 | b1@W2+b2]  (single N=256 MXU matmul),
    then the two logical outputs are stored directly (no XLA post-slice)."""
    x = x_ref[...].astype(w_ref.dtype)          # in-kernel cast (no-op on the f32 path)
    acc = jnp.dot(x, w_ref[...], preferred_element_type=jnp.float32) + b_ref[...]
    o1_ref[...] = acc[:, :o1_ref.shape[1]].astype(o1_ref.dtype)
    o2_ref[...] = acc[:, op_pad:op_pad + o2_ref.shape[1]].astype(o2_ref.dtype)


def prepare_params(w1, b1, w2, b2, compute_dtype=jnp.float32):
    """Fold the second Linear into the first and pad to lane-aligned widths (done ONCE).

    Returns (wc, bc) with wc: (Dp, Op+Cp) in `compute_dtype`, bc: (1, Op+Cp) f32 where
      wc[:, :O]        = W1            bc[:, :O]        = b1
      wc[:, Op:Op+C]   = W1 @ W2       bc[:, Op:Op+C]   = b1 @ W2 + b2
    """
    D, O = w1.shape
    C = w2.shape[1]
    Dp = _round_up(D, 128)
    Op = _round_up(O, 128)
    Cp = _round_up(C, 128)

    w12 = jnp.dot(w1, w2, precision=jax.lax.Precision.HIGHEST)
    b12 = jnp.dot(b1, w2, precision=jax.lax.Precision.HIGHEST) + b2

    wc = jnp.zeros((Dp, Op + Cp), jnp.float32)
    wc = wc.at[:D, :O].set(w1).at[:D, Op:Op + C].set(w12)
    bc = jnp.zeros((1, Op + Cp), jnp.float32)
    bc = bc.at[0, :O].set(b1).at[0, Op:Op + C].set(b12)
    # Store weights in the compute dtype once (no per-call cast); bias stays f32 (added post-MXU).
    return wc.astype(compute_dtype), bc


@functools.partial(jax.jit,
                   static_argnames=("out_dim", "n_clusters", "tm", "out_dtype"))
def linear_model_forward(x, wc, bc, *, out_dim, n_clusters, tm=1024,
                         out_dtype=jnp.float32):
    """x: (B, S, D) f32. wc/bc: prepared (folded + padded) params from prepare_params().
    Returns (x1: (B, S, out_dim), x2: (B, S, n_clusters))."""
    B, S, D = x.shape
    Dp, Np = wc.shape                        # Np = Op + Cp (lane-padded fused width)
    Op = _round_up(out_dim, 128)
    M = B * S

    x2d = x.reshape(M, D)
    if D != Dp:                              # feature dim already 128-aligned for D=256/768
        x2d = jnp.pad(x2d, ((0, 0), (0, Dp - D)))

    # Row tile: large for MXU/pipeline efficiency, multiple of 8, but always >= 2 grid
    # steps so dimension_semantics=("parallel",) actually shards across v7x's 2 TCs.
    tm_eff = max(8, min(tm, _round_up(pl.cdiv(M, 2), 8)))
    grid = (pl.cdiv(M, tm_eff),)             # ragged last block handled by Pallas masking

    # Explicit scoped-VMEM budget: double-buffered x + outputs + resident weight/bias, with headroom.
    xb = jnp.dtype(x2d.dtype).itemsize
    wb = jnp.dtype(wc.dtype).itemsize
    ob = jnp.dtype(out_dtype).itemsize
    vmem_need = (2 * tm_eff * Dp * xb
                 + 2 * tm_eff * (out_dim + n_clusters) * ob
                 + 2 * Dp * Np * wb
                 + 2 * Np * 4)
    vmem_limit = int(min(max(2 * vmem_need, 16 * 1024 * 1024), 64 * 1024 * 1024))

    cost = pl.CostEstimate(
        flops=2 * M * Dp * Np,
        transcendentals=0,
        bytes_accessed=M * Dp * xb + Dp * Np * wb
                       + M * (out_dim + n_clusters) * ob,
    )

    x1, x_cyc = pl.pallas_call(
        functools.partial(fused_linear_kernel, op_pad=Op),
        out_shape=(jax.ShapeDtypeStruct((M, out_dim), out_dtype),
                   jax.ShapeDtypeStruct((M, n_clusters), out_dtype)),
        grid=grid,
        in_specs=[
            pl.BlockSpec((tm_eff, Dp), lambda i: (i, 0)),   # x row tile
            pl.BlockSpec((Dp, Np), lambda i: (0, 0)),       # fused weight (VMEM-resident)
            pl.BlockSpec((1, Np), lambda i: (0, 0)),        # fused bias (VMEM-resident)
        ],
        out_specs=(pl.BlockSpec((tm_eff, out_dim), lambda i: (i, 0)),
                   pl.BlockSpec((tm_eff, n_clusters), lambda i: (i, 0))),
        compiler_params=pltpu.CompilerParams(
            dimension_semantics=("parallel",),
            vmem_limit_bytes=vmem_limit),
        cost_estimate=cost,
    )(x2d, wc, bc)

    return x1.reshape(B, S, out_dim), x_cyc.reshape(B, S, n_clusters)


def init_linear_model_params(key, input_dim=INPUT_DIM, output_dim=OUTPUT_DIM,
                             n_clusters=N_CLUSTERS):
    """Deterministic init mimicking torch.nn.Linear default (U[-1/sqrt(fan_in), 1/sqrt(fan_in)])."""
    k1, k2, k3, k4 = jax.random.split(key, 4)
    b = 1.0 / jnp.sqrt(jnp.float32(input_dim))
    w1 = jax.random.uniform(k1, (input_dim, output_dim), jnp.float32, -b, b)
    b1 = jax.random.uniform(k2, (output_dim,), jnp.float32, -b, b)
    b2_ = 1.0 / jnp.sqrt(jnp.float32(output_dim))
    w2 = jax.random.uniform(k3, (output_dim, n_clusters), jnp.float32, -b2_, b2_)
    b2 = jax.random.uniform(k4, (n_clusters,), jnp.float32, -b2_, b2_)
    return w1, b1, w2, b2


if __name__ == "__main__":
    key = jax.random.PRNGKey(0)
    kx, kp = jax.random.split(key)

    B, S, D = 2, 8, INPUT_DIM
    x = jax.random.normal(kx, (B, S, D), jnp.float32)
    w1, b1, w2, b2 = init_linear_model_params(kp)

    # Fold + pad weights once, outside the jitted forward (f32 compute path by default).
    wc, bc = prepare_params(w1, b1, w2, b2)

    x1, x_cyc = linear_model_forward(x, wc, bc,
                                     out_dim=OUTPUT_DIM, n_clusters=N_CLUSTERS)
    jax.block_until_ready((x1, x_cyc))

    # correctness check against plain (two-step) JAX reference
    ref1 = x @ w1 + b1
    ref2 = ref1 @ w2 + b2
    assert x1.shape == (B, S, OUTPUT_DIM) and x_cyc.shape == (B, S, N_CLUSTERS)
    assert jnp.allclose(x1, ref1, atol=1e-4, rtol=1e-4)
    assert jnp.allclose(x_cyc, ref2, atol=1e-4, rtol=1e-4)

    print("KERNEL_OK")
</pallas_src>

<mosaic_0001>
module attributes {stable_mosaic.version = 11 : i64} {
  func.func @fused_linear_kernel(%arg0: i32, %arg1: memref<8x256xf32, #tpu.memory_space<vmem>>, %arg2: memref<256x256xf32, #tpu.memory_space<vmem>>, %arg3: memref<1x256xf32, #tpu.memory_space<vmem>>, %arg4: memref<8x102xf32, #tpu.memory_space<vmem>>, %arg5: memref<8x100xf32, #tpu.memory_space<vmem>>) attributes {dimension_semantics = [#tpu.dimension_semantics<parallel>], iteration_bounds = array<i64: 2>, scalar_prefetch = 0 : i64, scratch_operands = 0 : i64, tpu.core_type = #tpu.core_type<tc>, window_params = [{transform_indices = @transform_0, window_bounds = array<i64: 8, 256>}, {pipeline_mode = #tpu.pipeline_mode<synchronous>, transform_indices = @transform_1, window_bounds = array<i64: 256, 256>}, {pipeline_mode = #tpu.pipeline_mode<synchronous>, transform_indices = @transform_2, window_bounds = array<i64: 1, 256>}, {transform_indices = @transform_3, window_bounds = array<i64: 8, 102>}, {transform_indices = @transform_4, window_bounds = array<i64: 8, 100>}]} {
    %c0 = arith.constant 0 : index
    %c0_0 = arith.constant 0 : index
    %0 = vector.load %arg1[%c0, %c0_0] : memref<8x256xf32, #tpu.memory_space<vmem>>, vector<8x256xf32>
    %c0_1 = arith.constant 0 : index
    %c0_2 = arith.constant 0 : index
    %1 = vector.load %arg2[%c0_1, %c0_2] : memref<256x256xf32, #tpu.memory_space<vmem>>, vector<256x256xf32>
    %cst = arith.constant dense<0.000000e+00> : vector<8x256xf32>
    %2 = tpu.matmul %0, %1, %cst {dimension_numbers = #tpu.dot_dimension_numbers<[1], [0], [0], [1], [0, 0, 1, 1], [], []>} : vector<8x256xf32>, vector<256x256xf32>, vector<8x256xf32> -> vector<8x256xf32>
    %c0_3 = arith.constant 0 : index
    %c0_4 = arith.constant 0 : index
    %3 = vector.load %arg3[%c0_3, %c0_4] : memref<1x256xf32, #tpu.memory_space<vmem>>, vector<1x256xf32>
    %4 = vector.broadcast %3 : vector<1x256xf32> to vector<8x256xf32>
    %5 = arith.addf %2, %4 : vector<8x256xf32>
    %6 = vector.extract_strided_slice %5 {offsets = [0, 0], sizes = [8, 102], strides = [1, 1]} : vector<8x256xf32> to vector<8x102xf32>
    %c0_5 = arith.constant 0 : index
    %c0_6 = arith.constant 0 : index
    %7 = vector.load %arg4[%c0_5, %c0_6] : memref<8x102xf32, #tpu.memory_space<vmem>>, vector<8x102xf32>
    tpu.vector_store %arg4[%c0_5, %c0_6], %6 {strides = array<i32>} : memref<8x102xf32, #tpu.memory_space<vmem>>, vector<8x102xf32>,
    %8 = vector.extract_strided_slice %5 {offsets = [0, 128], sizes = [8, 100], strides = [1, 1]} : vector<8x256xf32> to vector<8x100xf32>
    %c0_7 = arith.constant 0 : index
    %c0_8 = arith.constant 0 : index
    %9 = vector.load %arg5[%c0_7, %c0_8] : memref<8x100xf32, #tpu.memory_space<vmem>>, vector<8x100xf32>
    tpu.vector_store %arg5[%c0_7, %c0_8], %8 {strides = array<i32>} : memref<8x100xf32, #tpu.memory_space<vmem>>, vector<8x100xf32>,
    return
  }
  func.func @transform_0(%arg0: i32) -> (i32, i32) {
    %c0_i32 = arith.constant 0 : i32
    %c0_i32_0 = arith.constant 0 : i32
    return %arg0, %c0_i32 : i32, i32
  }
  func.func @transform_1(%arg0: i32) -> (i32, i32) {
    %c0_i32 = arith.constant 0 : i32
    %c0_i32_0 = arith.constant 0 : i32
    %c0_i32_1 = arith.constant 0 : i32
    return %c0_i32, %c0_i32_0 : i32, i32
  }
  func.func @transform_2(%arg0: i32) -> (i32, i32) {
    %c0_i32 = arith.constant 0 : i32
    %c0_i32_0 = arith.constant 0 : i32
    %c0_i32_1 = arith.constant 0 : i32
    return %c0_i32, %c0_i32_0 : i32, i32
  }
  func.func @transform_3(%arg0: i32) -> (i32, i32) {
    %c0_i32 = arith.constant 0 : i32
    %c0_i32_0 = arith.constant 0 : i32
    return %arg0, %c0_i32 : i32, i32
  }
  func.func @transform_4(%arg0: i32) -> (i32, i32) {
    %c0_i32 = arith.constant 0 : i32
    %c0_i32_0 = arith.constant 0 : i32
    return %arg0, %c0_i32 : i32, i32
  }
}

</mosaic_0001>

<llo_original>
// kernel: linear_model_forward.1
$region0: #{linear_model_forward.1}
  #allocation0 [shape = 'u32[]', space=smem, size = 0x4, offset = 0x4, fixed_abs, tag = 'smem constant byte address 0x4 - core index']
  #allocation1 [shape = 'u32[144,128]{1,0:T(1,128)}', space=vmem, size = 0x12000, scoped, tag = 'internal scratch']
  %s0 = inlined_call_operand.hbm [shape: f32[16,256], index: 0, kind: input, shape index: {}]
  %s1 = inlined_call_operand.hbm [shape: f32[256,256], index: 1, kind: input, shape index: {}]
  %s2 = inlined_call_operand.vmem [shape: f32[1,256], index: 2, kind: input, shape index: {}]
  %s3 = inlined_call_operand.hbm [shape: f32[16,102], index: 3, kind: output, shape index: {0}]
  %s4 = inlined_call_operand.hbm [shape: f32[16,100], index: 4, kind: output, shape index: {1}]
  %5 = xla_tuple %s3, %s4
  %s6 = sld [smem:[#allocation0]]
  $region61: #{linear_model_forward.1} parent=0
    _
  %s8 = ssub.s32 1, %s6
  %s9 = scalar_select 0, %s8, %s6
  $region1: #{linear_model_forward.1} parent=0
    #allocation2 [shape = 'u8[16384]{0}', space=vmem, size = 0x4000, scoped, tag = 'input window, operand 0']
    #allocation3 [shape = 's32[2]{0}', space=sflag, size = 0x8, scoped, tag = 'scoped memory for linear_model_forward.1']
    #allocation4 [shape = 's32[2]{0}', space=sflag, size = 0x8, scoped, tag = 'scoped memory for linear_model_forward.1']
    #allocation5 [shape = 'u8[262144]{0}', space=vmem, size = 0x40000, scoped, tag = 'input window, operand 1, single buffered']
    #allocation6 [shape = 's32[1]{0}', space=sflag, size = 0x4, scoped, tag = 'scoped memory for linear_model_forward.1']
    #allocation7 [shape = 'u8[8192]{0}', space=vmem, size = 0x2000, scoped, tag = 'output window, operand 0']
    #allocation8 [shape = 'u8[8192]{0}', space=vmem, size = 0x2000, scoped, tag = 'output window, operand 1']
    #allocation9 [shape = 's32[2]{0}', space=sflag, size = 0x8, scoped, tag = 'scoped memory for linear_model_forward.1']
    %10 = vsyncpa [#allocation3], 0
    %s11 = scalar_lea.sflag [#allocation3], 1
    %12 = vsyncpa %s11, 0
    %13 = vsyncpa [#allocation6], 0
    %14 = vsyncpa [#allocation4], 0
    %s15 = scalar_lea.sflag [#allocation4], 1
    %16 = vsyncpa %s15, 0
    %17 = vsyncpa [#allocation9], 0
    %s18 = scalar_lea.sflag [#allocation9], 1
    %19 = vsyncpa %s18, 0
    loop: start=0, step=1, limit=4
    $region2: #{linear_model_forward.1} parent=1 // loop_pre_header
      _
    $region3: #{linear_model_forward.1} parent=1 // loop_header
      %s21 = sphi 0, %s25
      %p22 = scmp.ge.s32.totalorder %s21, 4
      %s31 = sphi 0, %s33
      %s34 = sphi 0, %s31
      %s35 = sphi 0, %s34
      %s51 = sphi 0, %s35
      %s55 = sphi 0, %s55
      %s57 = sphi 0, %s55
      %s58 = sphi 0, %s57
      %s72 = sphi 0, %s58
      %s76 = sphi 0, %s76
      %s78 = sphi 0, %s76
      %s79 = sphi 0, %s78
      %s93 = sphi 0, %s79
      %s99 = sphi 0, %s101
      %s102 = sphi 0, %s99
      %s103 = sphi 0, %s102
      %s119 = sphi 0, %s103
      %s125 = sphi 0, %s127
      %s128 = sphi 0, %s125
      %s129 = sphi 0, %s128
      %s145 = sphi 0, %s129
    $region4: #{linear_model_forward.1} parent=1 // loop_header_branch
      %24 = sbr.rel (%p22) target = $region8
    $region5: #{linear_model_forward.1} parent=1 // loop_body
      %s26 = ssub.s32 %s21, 1
      %s27 = ssub.s32 %s21, 2
      %s28 = sadd.s32 %s21, 1
      %s29 = ssub.s32 %s21, %s28
      %p30 = scmp.eq.s32.totalorder %s29, 0
      %s32 = sadd.s32 %s31, 1
      %s33 = scalar_select %p30, %s31, %s32
      %p36 = pneg %p30
      %p37 = scmp.eq.s32.totalorder %s21, 1
      %p38 = por %p36, %p37
      %p39 = scmp.ne.s32.totalorder %s31, %s34
      %p40 = scmp.eq.s32.totalorder %s21, 0
      %p41 = por %p39, %p40
      %p42 = scmp.ne.s32.totalorder %s31, %s34
      %p43 = scmp.eq.s32.totalorder %s26, 1
      %p44 = por %p42, %p43
      %p45 = scmp.ne.s32.totalorder %s34, %s35
      %p46 = scmp.eq.s32.totalorder %s26, 0
      %p47 = por %p45, %p46
      %p48 = scmp.ne.s32.totalorder %s34, %s35
      %p49 = scmp.eq.s32.totalorder %s27, 1
      %p50 = por %p48, %p49
      %p52 = scmp.ne.s32.totalorder %s35, %s51
      %p53 = scmp.eq.s32.totalorder %s27, 0
      %p54 = por %p52, %p53
      %s56 = sadd.s32 %s55, 1
      %p59 = scmp.eq.s32.totalorder %s21, 1
      %p60 = scmp.ne.s32.totalorder %s55, %s57
      %p61 = scmp.eq.s32.totalorder %s21, 0
      %p62 = por %p60, %p61
      %p63 = scmp.ne.s32.totalorder %s55, %s57
      %p64 = scmp.eq.s32.totalorder %s26, 1
      %p65 = por %p63, %p64
      %p66 = scmp.ne.s32.totalorder %s57, %s58
      %p67 = scmp.eq.s32.totalorder %s26, 0
      %p68 = por %p66, %p67
      %p69 = scmp.ne.s32.totalorder %s57, %s58
      %p70 = scmp.eq.s32.totalorder %s27, 1
      %p71 = por %p69, %p70
      %p73 = scmp.ne.s32.totalorder %s58, %s72
      %p74 = scmp.eq.s32.totalorder %s27, 0
      %p75 = por %p73, %p74
      %s77 = sadd.s32 %s76, 1
      %p80 = scmp.eq.s32.totalorder %s21, 1
      %p81 = scmp.ne.s32.totalorder %s76, %s78
      %p82 = scmp.eq.s32.totalorder %s21, 0
      %p83 = por %p81, %p82
      %p84 = scmp.ne.s32.totalorder %s76, %s78
      %p85 = scmp.eq.s32.totalorder %s26, 1
      %p86 = por %p84, %p85
      %p87 = scmp.ne.s32.totalorder %s78, %s79
      %p88 = scmp.eq.s32.totalorder %s26, 0
      %p89 = por %p87, %p88
      %p90 = scmp.ne.s32.totalorder %s78, %s79
      %p91 = scmp.eq.s32.totalorder %s27, 1
      %p92 = por %p90, %p91
      %p94 = scmp.ne.s32.totalorder %s79, %s93
      %p95 = scmp.eq.s32.totalorder %s27, 0
      %p96 = por %p94, %p95
      %s97 = ssub.s32 %s21, %s28
      %p98 = scmp.eq.s32.totalorder %s97, 0
      %s100 = sadd.s32 %s99, 1
      %s101 = scalar_select %p98, %s99, %s100
      %p104 = pneg %p98
      %p105 = scmp.eq.s32.totalorder %s21, 1
      %p106 = por %p104, %p105
      %p107 = scmp.ne.s32.totalorder %s99, %s102
      %p108 = scmp.eq.s32.totalorder %s21, 0
      %p109 = por %p107, %p108
      %p110 = scmp.ne.s32.totalorder %s99, %s102
      %p111 = scmp.eq.s32.totalorder %s26, 1
      %p112 = por %p110, %p111
      %p113 = scmp.ne.s32.totalorder %s102, %s103
      %p114 = scmp.eq.s32.totalorder %s26, 0
      %p115 = por %p113, %p114
      %p116 = scmp.ne.s32.totalorder %s102, %s103
      %p117 = scmp.eq.s32.totalorder %s27, 1
      %p118 = por %p116, %p117
      %p120 = scmp.ne.s32.totalorder %s103, %s119
      %p121 = scmp.eq.s32.totalorder %s27, 0
      %p122 = por %p120, %p121
      %s123 = ssub.s32 %s21, %s28
      %p124 = scmp.eq.s32.totalorder %s123, 0
      %s126 = sadd.s32 %s125, 1
      %s127 = scalar_select %p124, %s125, %s126
      %p130 = pneg %p124
      %p131 = scmp.eq.s32.totalorder %s21, 1
      %p132 = por %p130, %p131
      %p133 = scmp.ne.s32.totalorder %s125, %s128
      %p134 = scmp.eq.s32.totalorder %s21, 0
      %p135 = por %p133, %p134
      %p136 = scmp.ne.s32.totalorder %s125, %s128
      %p137 = scmp.eq.s32.totalorder %s26, 1
      %p138 = por %p136, %p137
      %p139 = scmp.ne.s32.totalorder %s128, %s129
      %p140 = scmp.eq.s32.totalorder %s26, 0
      %p141 = por %p139, %p140
      %p142 = scmp.ne.s32.totalorder %s128, %s129
      %p143 = scmp.eq.s32.totalorder %s27, 1
      %p144 = por %p142, %p143
      %p146 = scmp.ne.s32.totalorder %s129, %s145
      %p147 = scmp.eq.s32.totalorder %s27, 0
      %p148 = por %p146, %p147
      %p149 = scmp.le.s32.totalorder 1, %s21
      %p150 = scmp.lt.s32.totalorder %s21, 3
      %p151 = pnand %p149, %p150
      %p152 = pneg %p151
      // Predicated region
      $region9: #{linear_model_forward.1} parent=5 // pred_check
        _
      $region10: #{linear_model_forward.1} parent=5 // pred_check_branch
        %154 = sbr.rel (%p151) target = $region12
      $region11: #{linear_model_forward.1} parent=5 // pred_region
        %s155 = ssub.s32 %s21, 1
        // Predicated region
        $region13: #{linear_model_forward.1} parent=11 // pred_check
          %p156 = pneg %p68
        $region14: #{linear_model_forward.1} parent=11 // pred_check_branch
          %158 = sbr.rel (%p156) target = $region16
        $region15: #{linear_model_forward.1} parent=11 // pred_region
          %s160 = ssub.s32 8192, 8192
          %161 = vsyncadd [#allocation6], %s160
          %s162 = sshll.u32 [#allocation5], 4
          %s163 = int_to_ptr.vmem [resolvable:$true] %s162
          %168 = dma.hbm_to_vmem [thread:$0]  %s1, 8192, %s163, [#allocation6], 256, 256, 16
        $region16: #{linear_model_forward.1} parent=11 // pred_fallthru
          _
        // Predicated region
        $region17: #{linear_model_forward.1} parent=11 // pred_check
          %p169 = pneg %p89
        $region18: #{linear_model_forward.1} parent=11 // pred_check_branch
          %171 = sbr.rel (%p169) target = $region20
        $region19: #{linear_model_forward.1} parent=11 // pred_region
          _
        $region20: #{linear_model_forward.1} parent=11 // pred_fallthru
          _
      $region12: #{linear_model_forward.1} parent=5 // pred_fallthru
        _
      %p172 = scmp.lt.s32.totalorder %s21, 2
      // Predicated region
      $region21: #{linear_model_forward.1} parent=5 // pred_check
        %p173 = pneg %p172
      $region22: #{linear_model_forward.1} parent=5 // pred_check_branch
        %175 = sbr.rel (%p173) target = $region24
      $region23: #{linear_model_forward.1} parent=5 // pred_region
        // Predicated region
        $region25: #{linear_model_forward.1} parent=23 // pred_check
          %p176 = pneg %p41
        $region26: #{linear_model_forward.1} parent=23 // pred_check_branch
          %178 = sbr.rel (%p176) target = $region28
        $region27: #{linear_model_forward.1} parent=23 // pred_region
          %s179 = sand.u32 %s31, 1
          %s180 = scalar_lea.sflag [#allocation3], %s179
          %s181 = sand.u32 %s31, 1
          %s182 = smul.addr %s181, 16
          %s183 = scalar_lea.vmem [#allocation2], %s182
          %s185 = ssub.s32 256, 256
          %186 = vsyncadd %s180, %s185
          %s187 = smul.addr %s21, 2
          %s188 = smul.addr %s187, 128
          %s189 = scalar_lea.hbm %s0, %s188
          %s191 = sshll.u32 %s183, 4
          %s192 = int_to_ptr.vmem [resolvable:$true] %s191
          %194 = dma.hbm_to_vmem [thread:$0]  %s189, 256, %s192, %s180
        $region28: #{linear_model_forward.1} parent=23 // pred_fallthru
          _
      $region24: #{linear_model_forward.1} parent=5 // pred_fallthru
        _
      %p195 = scmp.le.s32.totalorder 1, %s21
      %p196 = scmp.lt.s32.totalorder %s21, 3
      %p197 = pnand %p195, %p196
      %p198 = pneg %p197
      // Predicated region
      $region29: #{linear_model_forward.1} parent=5 // pred_check
        _
      $region30: #{linear_model_forward.1} parent=5 // pred_check_branch
        %200 = sbr.rel (%p197) target = $region32
      $region31: #{linear_model_forward.1} parent=5 // pred_region
        %s201 = ssub.s32 %s21, 1
        %s202 = sand.u32 %s34, 1
        %s203 = scalar_lea.sflag [#allocation3], %s202
        %s204 = sand.u32 %s34, 1
        %s205 = smul.addr %s204, 16
        %s206 = scalar_lea.vmem [#allocation2], %s205
        // Predicated region
        $region33: #{linear_model_forward.1} parent=31 // pred_check
          %p207 = pneg %p47
        $region34: #{linear_model_forward.1} parent=31 // pred_check_branch
          %209 = sbr.rel (%p207) target = $region36
        $region35: #{linear_model_forward.1} parent=31 // pred_region
          %210 = dma.done %s203, 256
        $region36: #{linear_model_forward.1} parent=31 // pred_fallthru
          _
        // Predicated region
        $region37: #{linear_model_forward.1} parent=31 // pred_check
          %p211 = pneg %p68
        $region38: #{linear_model_forward.1} parent=31 // pred_check_branch
          %213 = sbr.rel (%p211) target = $region40
        $region39: #{linear_model_forward.1} parent=31 // pred_region
          %214 = dma.done [#allocation6], 8192
        $region40: #{linear_model_forward.1} parent=31 // pred_fallthru
          _
        %s215 = sand.u32 %s34, 1
        %s216 = scalar_lea.sflag [#allocation3], %s215
        %s217 = sand.u32 %s34, 1
        %s218 = smul.addr %s217, 16
        %s219 = scalar_lea.vmem [#allocation2], %s218
        %p220 = pneg %p47
        %p221 = pneg %p44
        %p222 = pneg %p68
        %p223 = pneg %p65
        %p224 = pneg %p89
        %p225 = pneg %p86
        %p226 = pneg %p115
        %p227 = pneg %p112
        %s228 = sand.u32 %s102, 1
        %s229 = scalar_lea.sflag [#allocation4], %s228
        %s230 = sand.u32 %s102, 1
        %s231 = smul.addr %s230, 8
        %s232 = scalar_lea.vmem [#allocation7], %s231
        %p233 = pneg %p141
        %p234 = pneg %p138
        %s235 = sand.u32 %s128, 1
        %s236 = scalar_lea.sflag [#allocation9], %s235
        %s237 = sand.u32 %s128, 1
        %s238 = smul.addr %s237, 8
        %s239 = scalar_lea.vmem [#allocation8], %s238
        %v240 = vld [vmem:[%s206] sm:$0xff]
        %v241 = vld [vmem:[%s206 + $0x8] sm:$0xff]
        %v242 = vld [vmem:[#allocation5] sm:$0xff]
        %v243 = vld [vmem:[#allocation5 + $0x8] sm:$0xff]
        %v244 = vld [vmem:[#allocation5 + $0x10] sm:$0xff]
        %v245 = vld [vmem:[#allocation5 + $0x18] sm:$0xff]
        %v246 = vld [vmem:[#allocation5 + $0x20] sm:$0xff]
        %v247 = vld [vmem:[#allocation5 + $0x28] sm:$0xff]
        %v248 = vld [vmem:[#allocation5 + $0x30] sm:$0xff]
        %v249 = vld [vmem:[#allocation5 + $0x38] sm:$0xff]
        %v250 = vld [vmem:[#allocation5 + $0x40] sm:$0xff]
        %v251 = vld [vmem:[#allocation5 + $0x48] sm:$0xff]
        %v252 = vld [vmem:[#allocation5 + $0x50] sm:$0xff]
        %v253 = vld [vmem:[#allocation5 + $0x58] sm:$0xff]
        %v254 = vld [vmem:[#allocation5 + $0x60] sm:$0xff]
        %v255 = vld [vmem:[#allocation5 + $0x68] sm:$0xff]
        %v256 = vld [vmem:[#allocation5 + $0x70] sm:$0xff]
        %v257 = vld [vmem:[#allocation5 + $0x78] sm:$0xff]
        %v258 = vld [vmem:[#allocation5 + $0x80] sm:$0xff]
        %v259 = vld [vmem:[#allocation5 + $0x88] sm:$0xff]
        %v260 = vld [vmem:[#allocation5 + $0x90] sm:$0xff]
        %v261 = vld [vmem:[#allocation5 + $0x98] sm:$0xff]
        %v262 = vld [vmem:[#allocation5 + $0xa0] sm:$0xff]
        %v263 = vld [vmem:[#allocation5 + $0xa8] sm:$0xff]
        %v264 = vld [vmem:[#allocation5 + $0xb0] sm:$0xff]
        %v265 = vld [vmem:[#allocation5 + $0xb8] sm:$0xff]
        %v266 = vld [vmem:[#allocation5 + $0xc0] sm:$0xff]
        %v267 = vld [vmem:[#allocation5 + $0xc8] sm:$0xff]
        %v268 = vld [vmem:[#allocation5 + $0xd0] sm:$0xff]
        %v269 = vld [vmem:[#allocation5 + $0xd8] sm:$0xff]
        %v270 = vld [vmem:[#allocation5 + $0xe0] sm:$0xff]
        %v271 = vld [vmem:[#allocation5 + $0xe8] sm:$0xff]
        %v272 = vld [vmem:[#allocation5 + $0xf0] sm:$0xff]
        %v273 = vld [vmem:[#allocation5 + $0xf8] sm:$0xff]
        %v274 = vld [vmem:[#allocation5 + $0x100] sm:$0xff]
        %v275 = vld [vmem:[#allocation5 + $0x108] sm:$0xff]
        %v276 = vld [vmem:[#allocation5 + $0x110] sm:$0xff]
        %v277 = vld [vmem:[#allocation5 + $0x118] sm:$0xff]
        %v278 = vld [vmem:[#allocation5 + $0x120] sm:$0xff]
        %v279 = vld [vmem:[#allocation5 + $0x128] sm:$0xff]
        %v280 = vld [vmem:[#allocation5 + $0x130] sm:$0xff]
        %v281 = vld [vmem:[#allocation5 + $0x138] sm:$0xff]
        %v282 = vld [vmem:[#allocation5 + $0x140] sm:$0xff]
        %v283 = vld [vmem:[#allocation5 + $0x148] sm:$0xff]
        %v284 = vld [vmem:[#allocation5 + $0x150] sm:$0xff]
        %v285 = vld [vmem:[#allocation5 + $0x158] sm:$0xff]
        %v286 = vld [vmem:[#allocation5 + $0x160] sm:$0xff]
        %v287 = vld [vmem:[#allocation5 + $0x168] sm:$0xff]
        %v288 = vld [vmem:[#allocation5 + $0x170] sm:$0xff]
        %v289 = vld [vmem:[#allocation5 + $0x178] sm:$0xff]
        %v290 = vld [vmem:[#allocation5 + $0x180] sm:$0xff]
        %v291 = vld [vmem:[#allocation5 + $0x188] sm:$0xff]
        %v292 = vld [vmem:[#allocation5 + $0x190] sm:$0xff]
        %v293 = vld [vmem:[#allocation5 + $0x198] sm:$0xff]
        %v294 = vld [vmem:[#allocation5 + $0x1a0] sm:$0xff]
        %v295 = vld [vmem:[#allocation5 + $0x1a8] sm:$0xff]
        %v296 = vld [vmem:[#allocation5 + $0x1b0] sm:$0xff]
        %v297 = vld [vmem:[#allocation5 + $0x1b8] sm:$0xff]
        %v298 = vld [vmem:[#allocation5 + $0x1c0] sm:$0xff]
        %v299 = vld [vmem:[#allocation5 + $0x1c8] sm:$0xff]
        %v300 = vld [vmem:[#allocation5 + $0x1d0] sm:$0xff]
        %v301 = vld [vmem:[#allocation5 + $0x1d8] sm:$0xff]
        %v302 = vld [vmem:[#allocation5 + $0x1e0] sm:$0xff]
        %v303 = vld [vmem:[#allocation5 + $0x1e8] sm:$0xff]
        %v304 = vld [vmem:[#allocation5 + $0x1f0] sm:$0xff]
        %v305 = vld [vmem:[#allocation5 + $0x1f8] sm:$0xff]
        %v306 = vld [vmem:[%s2] sm:$0x3]
        %v308 = vlaneseq
        %v309 = vshrl.u32 %v308, 7
        %v310 = vsub.s32 0, %v309
        %v311 = vrot.slane %v306, %v310
        %v312 = vlaneseq
        %v313 = vshrl.u32 %v312, 7
        %v314 = vsub.s32 1, %v313
        %v315 = vrot.slane %v306, %v314
        %318 = vmatprep.subr.mxu0 %v243
        %319 = vmatpush1.msra.mxu0 %v242
        %320 = vmatprep.subr.mxu0 %v245
        %321 = vmatpush1.msra.mxu0 %v244
        %322 = vmatprep.subr.mxu0 %v247
        %323 = vmatpush1.msra.mxu0 %v246
        %324 = vmatprep.subr.mxu0 %v249
        %325 = vmatpush1.msra.mxu0 %v248
        %326 = vmatprep.subr.mxu0 %v251
        %327 = vmatpush1.msra.mxu0 %v250
        %328 = vmatprep.subr.mxu0 %v253
        %329 = vmatpush1.msra.mxu0 %v252
        %330 = vmatprep.subr.mxu0 %v255
        %331 = vmatpush1.msra.mxu0 %v254
        %332 = vmatprep.subr.mxu0 %v257
        %333 = vmatpush1.msra.mxu0 %v256
        %334 = vmatprep.subr.mxu0 %v259
        %335 = vmatpush1.msra.mxu0 %v258
        %336 = vmatprep.subr.mxu0 %v261
        %337 = vmatpush1.msra.mxu0 %v260
        %338 = vmatprep.subr.mxu0 %v263
        %339 = vmatpush1.msra.mxu0 %v262
        %340 = vmatprep.subr.mxu0 %v265
        %341 = vmatpush1.msra.mxu0 %v264
        %342 = vmatprep.subr.mxu0 %v267
        %343 = vmatpush1.msra.mxu0 %v266
        %344 = vmatprep.subr.mxu0 %v269
        %345 = vmatpush1.msra.mxu0 %v268
        %346 = vmatprep.subr.mxu0 %v271
        %347 = vmatpush1.msra.mxu0 %v270
        %348 = vmatprep.subr.mxu0 %v273
        %349 = vmatpush1.msra.mxu0 %v272
        %350 = vmatprep.subr.mxu0 %v275
        %351 = vmatpush1.msra.mxu0 %v274
        %352 = vmatprep.subr.mxu0 %v277
        %353 = vmatpush1.msra.mxu0 %v276
        %354 = vmatprep.subr.mxu0 %v279
        %355 = vmatpush1.msra.mxu0 %v278
        %356 = vmatprep.subr.mxu0 %v281
        %357 = vmatpush1.msra.mxu0 %v280
        %358 = vmatprep.subr.mxu0 %v283
        %359 = vmatpush1.msra.mxu0 %v282
        %360 = vmatprep.subr.mxu0 %v285
        %361 = vmatpush1.msra.mxu0 %v284
        %362 = vmatprep.subr.mxu0 %v287
        %363 = vmatpush1.msra.mxu0 %v286
        %364 = vmatprep.subr.mxu0 %v289
        %365 = vmatpush1.msra.mxu0 %v288
        %366 = vmatprep.subr.mxu0 %v291
        %367 = vmatpush1.msra.mxu0 %v290
        %368 = vmatprep.subr.mxu0 %v293
        %369 = vmatpush1.msra.mxu0 %v292
        %370 = vmatprep.subr.mxu0 %v295
        %371 = vmatpush1.msra.mxu0 %v294
        %372 = vmatprep.subr.mxu0 %v297
        %373 = vmatpush1.msra.mxu0 %v296
        %374 = vmatprep.subr.mxu0 %v299
        %375 = vmatpush1.msra.mxu0 %v298
        %376 = vmatprep.subr.mxu0 %v301
        %377 = vmatpush1.msra.mxu0 %v300
        %378 = vmatprep.subr.mxu0 %v303
        %379 = vmatpush1.msra.mxu0 %v302
        %380 = vmatprep.subr.mxu0 %v305
        %381 = vmatpush1.msra.mxu0 %v304
        %382 = vmatprep.mubr.f32.mxu0 %v241
        %383 = vmatmul.mubr.f32.gmra.mrb[0].mxu0 %v240
        %v384 = vpop.f32.mrb[0].mxu0
        %v385 = vadd.f32 %v311, %v384
        %v386 = vpop.f32.mrb[0].mxu0
        %v387 = vadd.f32 %v315, %v386
        %388 = vdwg.mxu0
        %vm389 = vcmask 834560
        %390 = vst.msk [vmem:[%s232] sm:$0xff] %vm389, %v385
        %vm391 = vcmask 818176
        %392 = vst.msk [vmem:[%s239] sm:$0xff] %vm391, %v387
        %s393 = sand.u32 %s102, 1
        %s394 = scalar_lea.sflag [#allocation4], %s393
        %s395 = sand.u32 %s102, 1
        %s396 = smul.addr %s395, 8
        %s397 = scalar_lea.vmem [#allocation7], %s396
        %s398 = sand.u32 %s128, 1
        %s399 = scalar_lea.sflag [#allocation9], %s398
        %s400 = sand.u32 %s128, 1
        %s401 = smul.addr %s400, 8
        %s402 = scalar_lea.vmem [#allocation8], %s401
        // Predicated region
        $region41: #{linear_model_forward.1} parent=31 // pred_check
          %p403 = pneg %p112
        $region42: #{linear_model_forward.1} parent=31 // pred_check_branch
          %405 = sbr.rel (%p403) target = $region44
        $region43: #{linear_model_forward.1} parent=31 // pred_region
          %s407 = ssub.s32 128, 128
          %408 = vsyncadd %s394, %s407
          %s409 = smul.addr %s26, 128
          %s410 = scalar_lea.hbm %s3, %s409
          %s412 = sshll.u32 %s397, 4
          %s413 = int_to_ptr.vmem [resolvable:$true] %s412
          %415 = dma.vmem_to_hbm [thread:$0]  %s413, 128, %s410, %s394
        $region44: #{linear_model_forward.1} parent=31 // pred_fallthru
          _
        // Predicated region
        $region45: #{linear_model_forward.1} parent=31 // pred_check
          %p416 = pneg %p138
        $region46: #{linear_model_forward.1} parent=31 // pred_check_branch
          %418 = sbr.rel (%p416) target = $region48
        $region47: #{linear_model_forward.1} parent=31 // pred_region
          %s420 = ssub.s32 128, 128
          %421 = vsyncadd %s399, %s420
          %s422 = smul.addr %s26, 128
          %s423 = scalar_lea.hbm %s4, %s422
          %s425 = sshll.u32 %s402, 4
          %s426 = int_to_ptr.vmem [resolvable:$true] %s425
          %428 = dma.vmem_to_hbm [thread:$0]  %s426, 128, %s423, %s399
        $region48: #{linear_model_forward.1} parent=31 // pred_fallthru
          _
      $region32: #{linear_model_forward.1} parent=5 // pred_fallthru
        _
      %p429 = scmp.le.s32.totalorder 2, %s21
      // Predicated region
      $region49: #{linear_model_forward.1} parent=5 // pred_check
        %p430 = pneg %p429
      $region50: #{linear_model_forward.1} parent=5 // pred_check_branch
        %432 = sbr.rel (%p430) target = $region52
      $region51: #{linear_model_forward.1} parent=5 // pred_region
        %s433 = ssub.s32 %s21, 2
        // Predicated region
        $region53: #{linear_model_forward.1} parent=51 // pred_check
          %p434 = pneg %p118
        $region54: #{linear_model_forward.1} parent=51 // pred_check_branch
          %436 = sbr.rel (%p434) target = $region56
        $region55: #{linear_model_forward.1} parent=51 // pred_region
          %s437 = sand.u32 %s103, 1
          %s438 = scalar_lea.sflag [#allocation4], %s437
          %s439 = sand.u32 %s103, 1
          %s440 = smul.addr %s439, 8
          %s441 = scalar_lea.vmem [#allocation7], %s440
          %442 = dma.done %s438, 128
        $region56: #{linear_model_forward.1} parent=51 // pred_fallthru
          _
        // Predicated region
        $region57: #{linear_model_forward.1} parent=51 // pred_check
          %p443 = pneg %p144
        $region58: #{linear_model_forward.1} parent=51 // pred_check_branch
          %445 = sbr.rel (%p443) target = $region60
        $region59: #{linear_model_forward.1} parent=51 // pred_region
          %s446 = sand.u32 %s129, 1
          %s447 = scalar_lea.sflag [#allocation9], %s446
          %s448 = sand.u32 %s129, 1
          %s449 = smul.addr %s448, 8
          %s450 = scalar_lea.vmem [#allocation8], %s449
          %451 = dma.done %s447, 128
        $region60: #{linear_model_forward.1} parent=51 // pred_fallthru
          _
      $region52: #{linear_model_forward.1} parent=5 // pred_fallthru
        _
    $region6: #{linear_model_forward.1} parent=1 // loop_footer
      %s25 = sadd.s32 1, %s21
    $region7: #{linear_model_forward.1} parent=1 // loop_footer_branch
      %20 = sbr.rel target = $region3
    $region8: #{linear_model_forward.1} parent=1 // loop_exit
      _
    %452 = vsyncpa [#allocation3], 1
    %s453 = scalar_lea.sflag [#allocation3], 1
    %454 = vsyncpa %s453, 1
    %455 = vsyncpa [#allocation6], 1
    %456 = vsyncpa [#allocation4], 1
    %s457 = scalar_lea.sflag [#allocation4], 1
    %458 = vsyncpa %s457, 1
    %459 = vsyncpa [#allocation9], 1
    %s460 = scalar_lea.sflag [#allocation9], 1
    %461 = vsyncpa %s460, 1

</llo_original>
